<compile_context>
chip_gen: v7x
topology: tpu7x:2x2x1
jax: 0.10.0
libtpu: 0.0.40
codegen_flags: <defaults>
</compile_context>

<pallas_src>
import functools
import math

import jax
import jax.numpy as jnp
from jax.experimental import pallas as pl
from jax.experimental.pallas import tpu as pltpu

_LANES = 128
_MAX_TILE_LANES = 16 * 1024  # <= ~256 KiB f32 per block at C=4


def _round_up(x, m):
    return (x + m - 1) // m * m


def _spatial_tiling(s):
    ts = min(_MAX_TILE_LANES, _round_up(s, _LANES))
    s_pad = _round_up(s, ts)
    return ts, s_pad, s_pad // ts


def _flatten_pad(a, s_pad):
    n, c = a.shape[0], a.shape[1]
    s = math.prod(a.shape[2:])
    a = a.reshape(n, c, s)
    if s_pad != s:
        a = jnp.pad(a, ((0, 0), (0, 0), (0, s_pad - s)))
    return a


# ----------------------------------------------------------------------------
# Kernel 1: channel softmax (softmax over dim=1), tiled over the spatial axis.
# ----------------------------------------------------------------------------
def _softmax_kernel(x_ref, o_ref):
    x = x_ref[...].astype(jnp.float32)                       # (C, TS)
    m = jnp.max(x, axis=0, keepdims=True)                    # (1, TS)
    e = jnp.exp(x - m)                                       # EUP
    inv = pl.reciprocal(jnp.sum(e, axis=0, keepdims=True))   # one rcp per pixel
    o_ref[...] = (e * inv).astype(o_ref.dtype)


def channel_softmax(logits):
    """softmax over dim=1 of an (N, C, *spatial) array, computed in f32."""
    shape = logits.shape
    n, c = shape[0], shape[1]
    s = math.prod(shape[2:])
    ts, s_pad, nt = _spatial_tiling(s)
    xp = _flatten_pad(logits, s_pad)
    out = pl.pallas_call(
        _softmax_kernel,
        out_shape=jax.ShapeDtypeStruct((n, c, s_pad), jnp.float32),
        grid_spec=pltpu.PrefetchScalarGridSpec(
            num_scalar_prefetch=0,
            grid=(n, nt),
            in_specs=[pl.BlockSpec((None, c, ts), lambda b, j: (b, 0, j))],
            out_specs=pl.BlockSpec((None, c, ts), lambda b, j: (b, 0, j)),
        ),
        compiler_params=pltpu.CompilerParams(
            dimension_semantics=("parallel", "parallel")),
    )(xp)
    return out[:, :, :s].reshape(shape)


# ----------------------------------------------------------------------------
# Kernel 2 + 3: per-sample L2 normalization (mirrors _l2_normalize).
# ----------------------------------------------------------------------------
def _sumsq_kernel(d_ref, o_ref):
    @pl.when(pl.program_id(1) == 0)
    def _():
        o_ref[...] = jnp.zeros_like(o_ref)

    d = d_ref[...].astype(jnp.float32)                        # (C, TS)
    o_ref[...] += jnp.sum(d * d, axis=0, keepdims=True)       # (1, TS)


def _scale_kernel(inv_ref, d_ref, o_ref):
    b = pl.program_id(0)
    scale = inv_ref[b]                                        # scalar from SMEM
    o_ref[...] = (d_ref[...].astype(jnp.float32) * scale).astype(o_ref.dtype)


def l2_normalize(d, eps=1e-8):
    """d / (||d||_2 + eps), norm taken over all of (C, *spatial) per sample."""
    shape = d.shape
    n, c = shape[0], shape[1]
    s = math.prod(shape[2:])
    ts, s_pad, nt = _spatial_tiling(s)
    dp = _flatten_pad(d, s_pad)  # zero padding -> no contribution to sum of squares

    partial = pl.pallas_call(
        _sumsq_kernel,
        out_shape=jax.ShapeDtypeStruct((n, 1, ts), jnp.float32),
        grid_spec=pltpu.PrefetchScalarGridSpec(
            num_scalar_prefetch=0,
            grid=(n, nt),
            in_specs=[pl.BlockSpec((None, c, ts), lambda b, j: (b, 0, j))],
            out_specs=pl.BlockSpec((None, 1, ts), lambda b, j: (b, 0, 0)),
        ),
        compiler_params=pltpu.CompilerParams(
            dimension_semantics=("parallel", "arbitrary")),
    )(dp)

    norm = jnp.sqrt(jnp.sum(partial, axis=(1, 2)))            # (N,)
    inv = (1.0 / (norm + eps)).astype(jnp.float32)

    out = pl.pallas_call(
        _scale_kernel,
        out_shape=jax.ShapeDtypeStruct((n, c, s_pad), d.dtype),
        grid_spec=pltpu.PrefetchScalarGridSpec(
            num_scalar_prefetch=0,
            grid=(n, nt),
            in_specs=[
                pl.BlockSpec(memory_space=pltpu.MemorySpace.SMEM),
                pl.BlockSpec((None, c, ts), lambda b, j: (b, 0, j)),
            ],
            out_specs=pl.BlockSpec((None, c, ts), lambda b, j: (b, 0, j)),
        ),
        compiler_params=pltpu.CompilerParams(
            dimension_semantics=("parallel", "parallel")),
    )(inv, dp)
    return out[:, :, :s].reshape(shape)


# ----------------------------------------------------------------------------
# Kernel 4: x + coef * d (used for the final, non-differentiated perturbation).
# ----------------------------------------------------------------------------
def _axpy_kernel(x_ref, d_ref, o_ref, *, coef):
    o_ref[...] = (x_ref[...].astype(jnp.float32)
                  + coef * d_ref[...].astype(jnp.float32)).astype(o_ref.dtype)


def perturb(x, d, coef):
    shape = x.shape
    n, c = shape[0], shape[1]
    s = math.prod(shape[2:])
    ts, s_pad, nt = _spatial_tiling(s)
    xp = _flatten_pad(x, s_pad)
    dp = _flatten_pad(d, s_pad)
    kernel = functools.partial(_axpy_kernel, coef=float(coef))
    out = pl.pallas_call(
        kernel,
        out_shape=jax.ShapeDtypeStruct((n, c, s_pad), x.dtype),
        grid_spec=pltpu.PrefetchScalarGridSpec(
            num_scalar_prefetch=0,
            grid=(n, nt),
            in_specs=[pl.BlockSpec((None, c, ts), lambda b, j: (b, 0, j)),
                      pl.BlockSpec((None, c, ts), lambda b, j: (b, 0, j))],
            out_specs=pl.BlockSpec((None, c, ts), lambda b, j: (b, 0, j)),
        ),
        compiler_params=pltpu.CompilerParams(
            dimension_semantics=("parallel", "parallel")),
    )(xp, dp)
    return out[:, :, :s].reshape(shape)


# ----------------------------------------------------------------------------
# Kernel 5: fused softmax + Binary_dice_loss partial sums.
# Per batch, accumulates [sum(p_hat*t), sum(p_hat), sum(t)] as (3, TS) lane
# partials directly in the resident output block; the final ratio is done in JAX.
# ----------------------------------------------------------------------------
def _dice_partial_kernel(logits_ref, tgt_ref, o_ref, *, ts, s_valid):
    j = pl.program_id(1)

    @pl.when(j == 0)
    def _():
        o_ref[...] = jnp.zeros_like(o_ref)

    x = logits_ref[...].astype(jnp.float32)                   # (C, TS)
    m = jnp.max(x, axis=0, keepdims=True)
    e = jnp.exp(x - m)
    inv = pl.reciprocal(jnp.sum(e, axis=0, keepdims=True))    # one rcp per pixel
    p_hat = e * inv                                           # (C, TS)
    if s_valid is not None:  # static flag: spatial axis was lane-padded
        lane = jax.lax.broadcasted_iota(jnp.int32, (1, ts), 1) + j * ts
        p_hat = jnp.where(lane < s_valid, p_hat, 0.0)
    t = tgt_ref[...].astype(jnp.float32)                      # (C, TS), zero-padded

    o_ref[0:1, :] += jnp.sum(p_hat * t, axis=0, keepdims=True)   # intersection
    o_ref[1:2, :] += jnp.sum(p_hat, axis=0, keepdims=True)       # sum(predictive)
    o_ref[2:3, :] += jnp.sum(t, axis=0, keepdims=True)           # sum(target)


def binary_dice_from_logits(logits, target_probs, ep=1e-8):
    """Binary_dice_loss(softmax(logits, dim=1), target_probs)."""
    n, c = logits.shape[0], logits.shape[1]
    s = math.prod(logits.shape[2:])
    ts, s_pad, nt = _spatial_tiling(s)
    lp = _flatten_pad(logits, s_pad)
    tp = _flatten_pad(target_probs, s_pad)
    kernel = functools.partial(_dice_partial_kernel, ts=ts,
                               s_valid=(s if s_pad != s else None))
    parts = pl.pallas_call(
        kernel,
        out_shape=jax.ShapeDtypeStruct((n, 3, ts), jnp.float32),
        grid_spec=pltpu.PrefetchScalarGridSpec(
            num_scalar_prefetch=0,
            grid=(n, nt),
            in_specs=[pl.BlockSpec((None, c, ts), lambda b, j: (b, 0, j)),
                      pl.BlockSpec((None, c, ts), lambda b, j: (b, 0, j))],
            out_specs=pl.BlockSpec((None, 3, ts), lambda b, j: (b, 0, 0)),
        ),
        compiler_params=pltpu.CompilerParams(
            dimension_semantics=("parallel", "arbitrary")),
    )(lp, tp)
    sums = jnp.sum(parts, axis=(0, 2))                        # [inter, sum_p, sum_t]
    intersection = 2.0 * sums[0] + ep
    union = sums[1] + sums[2] + ep
    return 1.0 - intersection / union


# ----------------------------------------------------------------------------
# VAT3d forward (mirrors the PyTorch module).
# ----------------------------------------------------------------------------
def binary_dice_loss_jax(predictive, target, ep=1e-8):
    # differentiable pure-JAX Binary_dice_loss, used inside jax.grad
    intersection = 2.0 * jnp.sum(predictive * target) + ep
    union = jnp.sum(predictive) + jnp.sum(target) + ep
    return 1.0 - intersection / union


class VAT3dPallas:
    """VAT3d.forward: `model` is a JAX callable whose first return value is the
    logits (like model(x)[0] in PyTorch). The random perturbation uses an
    explicit PRNG key instead of torch's global RNG."""

    def __init__(self, xi=10.0, epi=6.0, ip=1):
        self.xi = float(xi)
        self.epi = float(epi)
        self.ip = int(ip)

    def __call__(self, model, x, key):
        # with torch.no_grad(): pred = softmax(model(x)[0], dim=1)
        pred = jax.lax.stop_gradient(channel_softmax(model(x)[0]))

        # d = rand(x.shape) - 0.5 ; d = _l2_normalize(d)
        d = jax.random.uniform(key, x.shape, dtype=jnp.float32) - 0.5
        d = l2_normalize(d)

        def adv_loss(d_):  # pure JAX: differentiated w.r.t. the perturbation
            p_hat = jax.nn.softmax(model(x + self.xi * d_)[0], axis=1)
            return binary_dice_loss_jax(p_hat, pred)

        # TODO(synk): _disable_tracking_bn_stats (BatchNorm running-stat toggle)
        # has no equivalent for this stateless functional model.
        for _ in range(self.ip):
            g = jax.grad(adv_loss)(d)       # adv_distance.backward(); d.grad
            d = l2_normalize(g)             # d = _l2_normalize(d.grad)

        x_adv = perturb(x, d, self.epi)                          # x + epi * d
        lds = binary_dice_from_logits(model(x_adv)[0], pred)     # dice(softmax, pred)
        return lds


# ----------------------------------------------------------------------------
# Pure-JAX reference (for verification) and a toy segmentation model.
# ----------------------------------------------------------------------------
def _l2_normalize_jax(d, eps=1e-8):
    axes = tuple(range(1, d.ndim))
    norm = jnp.sqrt(jnp.sum(d * d, axis=axes, keepdims=True))
    return d / (norm + eps)


def _vat3d_reference(model, x, key, xi=10.0, epi=6.0, ip=1):
    pred = jax.lax.stop_gradient(jax.nn.softmax(model(x)[0], axis=1))
    d = jax.random.uniform(key, x.shape, dtype=jnp.float32) - 0.5
    d = _l2_normalize_jax(d)

    def adv_loss(d_):
        p_hat = jax.nn.softmax(model(x + xi * d_)[0], axis=1)
        return binary_dice_loss_jax(p_hat, pred)

    for _ in range(ip):
        g = jax.grad(adv_loss)(d)
        d = _l2_normalize_jax(g)
    p_hat = jax.nn.softmax(model(x + epi * d)[0], axis=1)
    return binary_dice_loss_jax(p_hat, pred)


def make_toy_model(key, c_in=1, c_hidden=8, c_cls=4):
    k1, k2 = jax.random.split(key)
    w1 = 0.5 * jax.random.normal(k1, (c_hidden, c_in), jnp.float32)
    w2 = 0.5 * jax.random.normal(k2, (c_cls, c_hidden), jnp.float32)

    def model(x):  # x: (N, C_in, D, H, W) -> (logits, aux), like model(x)[0]
        h = jnp.tanh(jnp.einsum('oc,ncdhw->nodhw', w1, x))
        logits = jnp.einsum('oc,ncdhw->nodhw', w2, h)
        return (logits, h)

    return model


if __name__ == "__main__":
    root = jax.random.PRNGKey(0)
    k_model, k_x, k_d = jax.random.split(root, 3)

    N, C_in, D, H, W = 2, 1, 8, 16, 16        # S = D*H*W = 2048 lanes
    x = jax.random.normal(k_x, (N, C_in, D, H, W), jnp.float32)
    model = make_toy_model(k_model, c_in=C_in, c_hidden=8, c_cls=4)

    vat = VAT3dPallas(xi=10.0, epi=6.0, ip=1)
    lds = vat(model, x, k_d)
    lds = jax.block_until_ready(lds)

    ref = _vat3d_reference(model, x, k_d, xi=10.0, epi=6.0, ip=1)
    ref = jax.block_until_ready(ref)

    assert bool(jnp.isfinite(lds)), lds
    assert abs(float(lds) - float(ref)) < 1e-3, (float(lds), float(ref))
    print("KERNEL_OK")
</pallas_src>

<mosaic_0001>
module attributes {stable_mosaic.version = 11 : i64} {
  func.func @_softmax_kernel(%arg0: i32, %arg1: i32, %arg2: memref<1x4x2048xf32, #tpu.memory_space<vmem>>, %arg3: memref<1x4x2048xf32, #tpu.memory_space<vmem>>) attributes {dimension_semantics = [#tpu.dimension_semantics<parallel>, #tpu.dimension_semantics<parallel>], iteration_bounds = array<i64: 2, 1>, scalar_prefetch = 0 : i64, scratch_operands = 0 : i64, tpu.core_type = #tpu.core_type<tc>, window_params = [{transform_indices = @transform_0, window_bounds = array<i64: 1, 4, 2048>}, {transform_indices = @transform_1, window_bounds = array<i64: 1, 4, 2048>}]} {
    %c0 = arith.constant 0 : index
    %c0_0 = arith.constant 0 : index
    %c0_1 = arith.constant 0 : index
    %0 = vector.load %arg2[%c0, %c0_0, %c0_1] : memref<1x4x2048xf32, #tpu.memory_space<vmem>>, vector<1x4x2048xf32>
    %1 = vector.shape_cast %0 : vector<1x4x2048xf32> to vector<4x2048xf32>
    %cst = arith.constant dense<0xFF800000> : vector<2048xf32>
    %2 = vector.multi_reduction <maximumf>, %1, %cst [0] : vector<4x2048xf32> to vector<2048xf32>
    %3 = vector.shape_cast %2 : vector<2048xf32> to vector<1x2048xf32>
    %4 = vector.broadcast %3 : vector<1x2048xf32> to vector<4x2048xf32>
    %5 = arith.subf %1, %4 : vector<4x2048xf32>
    %6 = math.exp %5 : vector<4x2048xf32>
    %cst_2 = arith.constant dense<0.000000e+00> : vector<2048xf32>
    %7 = vector.multi_reduction <add>, %6, %cst_2 [0] : vector<4x2048xf32> to vector<2048xf32>
    %8 = vector.shape_cast %7 : vector<2048xf32> to vector<1x2048xf32>
    %9 = tpu.reciprocal %8 : vector<1x2048xf32> -> vector<1x2048xf32>
    %10 = vector.broadcast %9 : vector<1x2048xf32> to vector<4x2048xf32>
    %11 = arith.mulf %6, %10 : vector<4x2048xf32>
    %c0_3 = arith.constant 0 : index
    %c0_4 = arith.constant 0 : index
    %c0_5 = arith.constant 0 : index
    %12 = vector.load %arg3[%c0_3, %c0_4, %c0_5] : memref<1x4x2048xf32, #tpu.memory_space<vmem>>, vector<1x4x2048xf32>
    %13 = vector.shape_cast %12 : vector<1x4x2048xf32> to vector<4x2048xf32>
    %14 = vector.shape_cast %11 : vector<4x2048xf32> to vector<1x4x2048xf32>
    tpu.vector_store %arg3[%c0_3, %c0_4, %c0_5], %14 {strides = array<i32>} : memref<1x4x2048xf32, #tpu.memory_space<vmem>>, vector<1x4x2048xf32>,
    return
  }
  func.func @transform_0(%arg0: i32, %arg1: i32) -> (i32, i32, i32) {
    %c0_i32 = arith.constant 0 : i32
    %c0_i32_0 = arith.constant 0 : i32
    return %arg0, %c0_i32, %arg1 : i32, i32, i32
  }
  func.func @transform_1(%arg0: i32, %arg1: i32) -> (i32, i32, i32) {
    %c0_i32 = arith.constant 0 : i32
    %c0_i32_0 = arith.constant 0 : i32
    return %arg0, %c0_i32, %arg1 : i32, i32, i32
  }
}

</mosaic_0001>

<llo_original>
// kernel: tpu_custom_call.1
$region0: #{tpu_custom_call.1}
  #allocation0 [shape = 'u32[]', space=smem, size = 0x4, offset = 0x4, fixed_abs, tag = 'smem constant byte address 0x4 - core index']
  #allocation1 [shape = 'u32[144,128]{1,0:T(1,128)}', space=vmem, size = 0x12000, scoped, tag = 'internal scratch']
  %s0 = inlined_call_operand.hbm [shape: f32[2,4,2048], index: 0, kind: input, shape index: {}]
  %s1 = inlined_call_operand.hbm [shape: f32[2,4,2048], index: 1, kind: output, shape index: {}]
  %s2 = sld [smem:[#allocation0]]
  $region41: #{tpu_custom_call.1} parent=0
    _
  %s4 = ssub.s32 1, %s2
  %s5 = scalar_select 0, %s4, %s2
  $region1: #{tpu_custom_call.1} parent=0
    #allocation2 [shape = 'u8[65536]{0}', space=vmem, size = 0x10000, scoped, tag = 'input window, operand 0']
    #allocation3 [shape = 's32[2]{0}', space=sflag, size = 0x8, scoped, tag = 'scoped memory for tpu_custom_call.1']
    #allocation4 [shape = 's32[2]{0}', space=sflag, size = 0x8, scoped, tag = 'scoped memory for tpu_custom_call.1']
    #allocation5 [shape = 'u8[65536]{0}', space=vmem, size = 0x10000, scoped, tag = 'output window, operand 0']
    %6 = vsyncpa [#allocation3], 0
    %s7 = scalar_lea.sflag [#allocation3], 1
    %8 = vsyncpa %s7, 0
    %9 = vsyncpa [#allocation4], 0
    %s10 = scalar_lea.sflag [#allocation4], 1
    %11 = vsyncpa %s10, 0
    loop: start=0, step=1, limit=4
    $region2: #{tpu_custom_call.1} parent=1 // loop_pre_header
      _
    $region3: #{tpu_custom_call.1} parent=1 // loop_header
      %s13 = sphi 0, %s17
      %p14 = scmp.ge.s32.totalorder %s13, 4
      %s20 = sphi 0, %s32
      %s21 = sphi 0, %s28
      %s22 = sphi 0, %s20
      %s23 = sphi 0, %s21
      %s24 = sphi 0, %s22
      %s25 = sphi 0, %s23
      %s37 = sphi 0, %s39
      %s40 = sphi 0, %s37
      %s41 = sphi 0, %s40
      %s57 = sphi 0, %s41
      %s65 = sphi 0, %s67
      %s68 = sphi 0, %s65
      %s69 = sphi 0, %s68
      %s85 = sphi 0, %s69
    $region4: #{tpu_custom_call.1} parent=1 // loop_header_branch
      %16 = sbr.rel (%p14) target = $region8
    $region5: #{tpu_custom_call.1} parent=1 // loop_body
      %s18 = ssub.s32 %s13, 1
      %s19 = ssub.s32 %s13, 2
      %s26 = sadd.s32 1, %s21
      %p27 = scmp.ge.s32.totalorder %s26, 1
      %s28 = scalar_select %p27, 0, %s26
      %s29 = sadd.s32 1, %s20
      %s30 = scalar_select %p27, %s29, %s20
      %p31 = scmp.ge.s32.totalorder %s30, 2
      %s32 = scalar_select %p31, 0, %s30
      %s33 = ssub.s32 %s20, %s32
      %s34 = ssub.s32 %s21, %s28
      %s35 = sor.u32 %s33, %s34
      %p36 = scmp.eq.s32.totalorder %s35, 0
      %s38 = sadd.s32 %s37, 1
      %s39 = scalar_select %p36, %s37, %s38
      %p42 = pneg %p36
      %p43 = scmp.eq.s32.totalorder %s13, 1
      %p44 = por %p42, %p43
      %p45 = scmp.ne.s32.totalorder %s37, %s40
      %p46 = scmp.eq.s32.totalorder %s13, 0
      %p47 = por %p45, %p46
      %p48 = scmp.ne.s32.totalorder %s37, %s40
      %p49 = scmp.eq.s32.totalorder %s18, 1
      %p50 = por %p48, %p49
      %p51 = scmp.ne.s32.totalorder %s40, %s41
      %p52 = scmp.eq.s32.totalorder %s18, 0
      %p53 = por %p51, %p52
      %p54 = scmp.ne.s32.totalorder %s40, %s41
      %p55 = scmp.eq.s32.totalorder %s19, 1
      %p56 = por %p54, %p55
      %p58 = scmp.ne.s32.totalorder %s41, %s57
      %p59 = scmp.eq.s32.totalorder %s19, 0
      %p60 = por %p58, %p59
      %s61 = ssub.s32 %s20, %s32
      %s62 = ssub.s32 %s21, %s28
      %s63 = sor.u32 %s61, %s62
      %p64 = scmp.eq.s32.totalorder %s63, 0
      %s66 = sadd.s32 %s65, 1
      %s67 = scalar_select %p64, %s65, %s66
      %p70 = pneg %p64
      %p71 = scmp.eq.s32.totalorder %s13, 1
      %p72 = por %p70, %p71
      %p73 = scmp.ne.s32.totalorder %s65, %s68
      %p74 = scmp.eq.s32.totalorder %s13, 0
      %p75 = por %p73, %p74
      %p76 = scmp.ne.s32.totalorder %s65, %s68
      %p77 = scmp.eq.s32.totalorder %s18, 1
      %p78 = por %p76, %p77
      %p79 = scmp.ne.s32.totalorder %s68, %s69
      %p80 = scmp.eq.s32.totalorder %s18, 0
      %p81 = por %p79, %p80
      %p82 = scmp.ne.s32.totalorder %s68, %s69
      %p83 = scmp.eq.s32.totalorder %s19, 1
      %p84 = por %p82, %p83
      %p86 = scmp.ne.s32.totalorder %s69, %s85
      %p87 = scmp.eq.s32.totalorder %s19, 0
      %p88 = por %p86, %p87
      %p89 = scmp.le.s32.totalorder 1, %s13
      %p90 = scmp.lt.s32.totalorder %s13, 3
      %p91 = pnand %p89, %p90
      %p92 = pneg %p91
      // Predicated region
      $region9: #{tpu_custom_call.1} parent=5 // pred_check
        _
      $region10: #{tpu_custom_call.1} parent=5 // pred_check_branch
        %94 = sbr.rel (%p91) target = $region12
      $region11: #{tpu_custom_call.1} parent=5 // pred_region
        %s95 = ssub.s32 %s13, 1
      $region12: #{tpu_custom_call.1} parent=5 // pred_fallthru
        _
      %p96 = scmp.lt.s32.totalorder %s13, 2
      // Predicated region
      $region13: #{tpu_custom_call.1} parent=5 // pred_check
        %p97 = pneg %p96
      $region14: #{tpu_custom_call.1} parent=5 // pred_check_branch
        %99 = sbr.rel (%p97) target = $region16
      $region15: #{tpu_custom_call.1} parent=5 // pred_region
        // Predicated region
        $region17: #{tpu_custom_call.1} parent=15 // pred_check
          %p100 = pneg %p47
        $region18: #{tpu_custom_call.1} parent=15 // pred_check_branch
          %102 = sbr.rel (%p100) target = $region20
        $region19: #{tpu_custom_call.1} parent=15 // pred_region
          %s103 = sand.u32 %s37, 1
          %s104 = scalar_lea.sflag [#allocation3], %s103
          %s105 = sand.u32 %s37, 1
          %s106 = smul.addr %s105, 64
          %s107 = scalar_lea.vmem [#allocation2], %s106
          %s108 = smul.u32 16, %s21
          %s110 = ssub.s32 1024, 1024
          %111 = vsyncadd %s104, %s110
          %s112 = smul.addr %s20, 16
          %s113 = sadd.s32 %s108, %s112
          %s114 = smul.addr %s113, 64
          %s115 = scalar_lea.hbm %s0, %s114
          %s117 = sshll.u32 %s107, 4
          %s118 = int_to_ptr.vmem [resolvable:$true] %s117
          %120 = dma.hbm_to_vmem [thread:$0]  %s115, 1024, %s118, %s104
        $region20: #{tpu_custom_call.1} parent=15 // pred_fallthru
          _
      $region16: #{tpu_custom_call.1} parent=5 // pred_fallthru
        _
      %p121 = scmp.le.s32.totalorder 1, %s13
      %p122 = scmp.lt.s32.totalorder %s13, 3
      %p123 = pnand %p121, %p122
      %p124 = pneg %p123
      // Predicated region
      $region21: #{tpu_custom_call.1} parent=5 // pred_check
        _
      $region22: #{tpu_custom_call.1} parent=5 // pred_check_branch
        %126 = sbr.rel (%p123) target = $region24
      $region23: #{tpu_custom_call.1} parent=5 // pred_region
        %s127 = ssub.s32 %s13, 1
        %s128 = sand.u32 %s40, 1
        %s129 = scalar_lea.sflag [#allocation3], %s128
        %s130 = sand.u32 %s40, 1
        %s131 = smul.addr %s130, 64
        %s132 = scalar_lea.vmem [#allocation2], %s131
        // Predicated region
        $region25: #{tpu_custom_call.1} parent=23 // pred_check
          %p133 = pneg %p53
        $region26: #{tpu_custom_call.1} parent=23 // pred_check_branch
          %135 = sbr.rel (%p133) target = $region28
        $region27: #{tpu_custom_call.1} parent=23 // pred_region
          %136 = dma.done %s129, 1024
        $region28: #{tpu_custom_call.1} parent=23 // pred_fallthru
          _
        %s137 = sand.u32 %s40, 1
        %s138 = scalar_lea.sflag [#allocation3], %s137
        %s139 = sand.u32 %s40, 1
        %s140 = smul.addr %s139, 64
        %s141 = scalar_lea.vmem [#allocation2], %s140
        %p142 = pneg %p53
        %p143 = pneg %p50
        %p144 = pneg %p81
        %p145 = pneg %p78
        %s146 = sand.u32 %s68, 1
        %s147 = scalar_lea.sflag [#allocation4], %s146
        %s148 = sand.u32 %s68, 1
        %s149 = smul.addr %s148, 64
        %s150 = scalar_lea.vmem [#allocation5], %s149
        %s151 = smul.u32 16, %s23
        %s152 = smul.u32 16, %s23
        %v153 = vld [vmem:[%s132] sm:$0xff]
        %v154 = vld [vmem:[%s132 + $0x8] sm:$0xff]
        %v155 = vld [vmem:[%s132 + $0x10] sm:$0xff]
        %v156 = vld [vmem:[%s132 + $0x18] sm:$0xff]
        %v157 = vld [vmem:[%s132 + $0x20] sm:$0xff]
        %v158 = vld [vmem:[%s132 + $0x28] sm:$0xff]
        %v159 = vld [vmem:[%s132 + $0x30] sm:$0xff]
        %v160 = vld [vmem:[%s132 + $0x38] sm:$0xff]
        %v169 = vcombine.high %v153, %v153
        %v170 = vcombine.high %v154, %v154
        %v171 = vcombine.high %v155, %v155
        %v172 = vcombine.high %v156, %v156
        %v173 = vcombine.high %v157, %v157
        %v174 = vcombine.high %v158, %v158
        %v175 = vcombine.high %v159, %v159
        %v176 = vcombine.high %v160, %v160
        %vm185 = vcmask 1043456
        %v186 = vsel %vm185, %v153, -inf
        %v187 = vrot.slane %v186, 4
        %v188 = vmax.f32 %v186, %v187
        %v189 = vrot.slane %v188, 2
        %v190 = vmax.f32 %v188, %v189
        %v191 = vrot.slane %v190, 1
        %v192 = vmax.f32 %v190, %v191
        %v193 = vsel %vm185, %v169, -inf
        %v194 = vrot.slane %v193, 4
        %v195 = vmax.f32 %v193, %v194
        %v196 = vrot.slane %v195, 2
        %v197 = vmax.f32 %v195, %v196
        %v198 = vrot.slane %v197, 1
        %v199 = vmax.f32 %v197, %v198
        %v200 = vsel %vm185, %v154, -inf
        %v201 = vrot.slane %v200, 4
        %v202 = vmax.f32 %v200, %v201
        %v203 = vrot.slane %v202, 2
        %v204 = vmax.f32 %v202, %v203
        %v205 = vrot.slane %v204, 1
        %v206 = vmax.f32 %v204, %v205
        %v207 = vsel %vm185, %v170, -inf
        %v208 = vrot.slane %v207, 4
        %v209 = vmax.f32 %v207, %v208
        %v210 = vrot.slane %v209, 2
        %v211 = vmax.f32 %v209, %v210
        %v212 = vrot.slane %v211, 1
        %v213 = vmax.f32 %v211, %v212
        %v214 = vsel %vm185, %v155, -inf
        %v215 = vrot.slane %v214, 4
        %v216 = vmax.f32 %v214, %v215
        %v217 = vrot.slane %v216, 2
        %v218 = vmax.f32 %v216, %v217
        %v219 = vrot.slane %v218, 1
        %v220 = vmax.f32 %v218, %v219
        %v221 = vsel %vm185, %v171, -inf
        %v222 = vrot.slane %v221, 4
        %v223 = vmax.f32 %v221, %v222
        %v224 = vrot.slane %v223, 2
        %v225 = vmax.f32 %v223, %v224
        %v226 = vrot.slane %v225, 1
        %v227 = vmax.f32 %v225, %v226
        %v228 = vsel %vm185, %v156, -inf
        %v229 = vrot.slane %v228, 4
        %v230 = vmax.f32 %v228, %v229
        %v231 = vrot.slane %v230, 2
        %v232 = vmax.f32 %v230, %v231
        %v233 = vrot.slane %v232, 1
        %v234 = vmax.f32 %v232, %v233
        %v235 = vsel %vm185, %v172, -inf
        %v236 = vrot.slane %v235, 4
        %v237 = vmax.f32 %v235, %v236
        %v238 = vrot.slane %v237, 2
        %v239 = vmax.f32 %v237, %v238
        %v240 = vrot.slane %v239, 1
        %v241 = vmax.f32 %v239, %v240
        %v242 = vsel %vm185, %v157, -inf
        %v243 = vrot.slane %v242, 4
        %v244 = vmax.f32 %v242, %v243
        %v245 = vrot.slane %v244, 2
        %v246 = vmax.f32 %v244, %v245
        %v247 = vrot.slane %v246, 1
        %v248 = vmax.f32 %v246, %v247
        %v249 = vsel %vm185, %v173, -inf
        %v250 = vrot.slane %v249, 4
        %v251 = vmax.f32 %v249, %v250
        %v252 = vrot.slane %v251, 2
        %v253 = vmax.f32 %v251, %v252
        %v254 = vrot.slane %v253, 1
        %v255 = vmax.f32 %v253, %v254
        %v256 = vsel %vm185, %v158, -inf
        %v257 = vrot.slane %v256, 4
        %v258 = vmax.f32 %v256, %v257
        %v259 = vrot.slane %v258, 2
        %v260 = vmax.f32 %v258, %v259
        %v261 = vrot.slane %v260, 1
        %v262 = vmax.f32 %v260, %v261
        %v263 = vsel %vm185, %v174, -inf
        %v264 = vrot.slane %v263, 4
        %v265 = vmax.f32 %v263, %v264
        %v266 = vrot.slane %v265, 2
        %v267 = vmax.f32 %v265, %v266
        %v268 = vrot.slane %v267, 1
        %v269 = vmax.f32 %v267, %v268
        %v270 = vsel %vm185, %v159, -inf
        %v271 = vrot.slane %v270, 4
        %v272 = vmax.f32 %v270, %v271
        %v273 = vrot.slane %v272, 2
        %v274 = vmax.f32 %v272, %v273
        %v275 = vrot.slane %v274, 1
        %v276 = vmax.f32 %v274, %v275
        %v277 = vsel %vm185, %v175, -inf
        %v278 = vrot.slane %v277, 4
        %v279 = vmax.f32 %v277, %v278
        %v280 = vrot.slane %v279, 2
        %v281 = vmax.f32 %v279, %v280
        %v282 = vrot.slane %v281, 1
        %v283 = vmax.f32 %v281, %v282
        %v284 = vsel %vm185, %v160, -inf
        %v285 = vrot.slane %v284, 4
        %v286 = vmax.f32 %v284, %v285
        %v287 = vrot.slane %v286, 2
        %v288 = vmax.f32 %v286, %v287
        %v289 = vrot.slane %v288, 1
        %v290 = vmax.f32 %v288, %v289
        %v291 = vsel %vm185, %v176, -inf
        %v292 = vrot.slane %v291, 4
        %v293 = vmax.f32 %v291, %v292
        %v294 = vrot.slane %v293, 2
        %v295 = vmax.f32 %v293, %v294
        %v296 = vrot.slane %v295, 1
        %v297 = vmax.f32 %v295, %v296
        %v314 = vcombine.low %v192, %v199
        %v315 = vcombine.low %v206, %v213
        %v316 = vcombine.low %v220, %v227
        %v317 = vcombine.low %v234, %v241
        %v318 = vcombine.low %v248, %v255
        %v319 = vcombine.low %v262, %v269
        %v320 = vcombine.low %v276, %v283
        %v321 = vcombine.low %v290, %v297
        %v330 = vsub.f32 %v153, %v314
        %v331 = vsub.f32 %v154, %v315
        %v332 = vsub.f32 %v155, %v316
        %v333 = vsub.f32 %v156, %v317
        %v334 = vsub.f32 %v157, %v318
        %v335 = vsub.f32 %v158, %v319
        %v336 = vsub.f32 %v159, %v320
        %v337 = vsub.f32 %v160, %v321
        %v338 = vmul.f32 %v330, 1.442695
        %v339 = vpow.pop %v338
        %v340 = vmul.f32 %v331, 1.442695
        %v341 = vpow.pop %v340
        %v342 = vmul.f32 %v332, 1.442695
        %v343 = vpow.pop %v342
        %v344 = vmul.f32 %v333, 1.442695
        %v345 = vpow.pop %v344
        %v346 = vmul.f32 %v334, 1.442695
        %v347 = vpow.pop %v346
        %v348 = vmul.f32 %v335, 1.442695
        %v349 = vpow.pop %v348
        %v350 = vmul.f32 %v336, 1.442695
        %v351 = vpow.pop %v350
        %v352 = vmul.f32 %v337, 1.442695
        %v353 = vpow.pop %v352
        %v362 = vcombine.high %v339, %v339
        %v363 = vcombine.high %v341, %v341
        %v364 = vcombine.high %v343, %v343
        %v365 = vcombine.high %v345, %v345
        %v366 = vcombine.high %v347, %v347
        %v367 = vcombine.high %v349, %v349
        %v368 = vcombine.high %v351, %v351
        %v369 = vcombine.high %v353, %v353
        %v378 = vsel %vm185, %v339, 0.0
        %v379 = vrot.slane %v378, 4
        %v380 = vadd.f32 %v378, %v379
        %v381 = vrot.slane %v380, 2
        %v382 = vadd.f32 %v380, %v381
        %v383 = vrot.slane %v382, 1
        %v384 = vadd.f32 %v382, %v383
        %v385 = vsel %vm185, %v362, 0.0
        %v386 = vrot.slane %v385, 4
        %v387 = vadd.f32 %v385, %v386
        %v388 = vrot.slane %v387, 2
        %v389 = vadd.f32 %v387, %v388
        %v390 = vrot.slane %v389, 1
        %v391 = vadd.f32 %v389, %v390
        %v392 = vsel %vm185, %v341, 0.0
        %v393 = vrot.slane %v392, 4
        %v394 = vadd.f32 %v392, %v393
        %v395 = vrot.slane %v394, 2
        %v396 = vadd.f32 %v394, %v395
        %v397 = vrot.slane %v396, 1
        %v398 = vadd.f32 %v396, %v397
        %v399 = vsel %vm185, %v363, 0.0
        %v400 = vrot.slane %v399, 4
        %v401 = vadd.f32 %v399, %v400
        %v402 = vrot.slane %v401, 2
        %v403 = vadd.f32 %v401, %v402
        %v404 = vrot.slane %v403, 1
        %v405 = vadd.f32 %v403, %v404
        %v406 = vsel %vm185, %v343, 0.0
        %v407 = vrot.slane %v406, 4
        %v408 = vadd.f32 %v406, %v407
        %v409 = vrot.slane %v408, 2
        %v410 = vadd.f32 %v408, %v409
        %v411 = vrot.slane %v410, 1
        %v412 = vadd.f32 %v410, %v411
        %v413 = vsel %vm185, %v364, 0.0
        %v414 = vrot.slane %v413, 4
        %v415 = vadd.f32 %v413, %v414
        %v416 = vrot.slane %v415, 2
        %v417 = vadd.f32 %v415, %v416
        %v418 = vrot.slane %v417, 1
        %v419 = vadd.f32 %v417, %v418
        %v420 = vsel %vm185, %v345, 0.0
        %v421 = vrot.slane %v420, 4
        %v422 = vadd.f32 %v420, %v421
        %v423 = vrot.slane %v422, 2
        %v424 = vadd.f32 %v422, %v423
        %v425 = vrot.slane %v424, 1
        %v426 = vadd.f32 %v424, %v425
        %v427 = vsel %vm185, %v365, 0.0
        %v428 = vrot.slane %v427, 4
        %v429 = vadd.f32 %v427, %v428
        %v430 = vrot.slane %v429, 2
        %v431 = vadd.f32 %v429, %v430
        %v432 = vrot.slane %v431, 1
        %v433 = vadd.f32 %v431, %v432
        %v434 = vsel %vm185, %v347, 0.0
        %v435 = vrot.slane %v434, 4
        %v436 = vadd.f32 %v434, %v435
        %v437 = vrot.slane %v436, 2
        %v438 = vadd.f32 %v436, %v437
        %v439 = vrot.slane %v438, 1
        %v440 = vadd.f32 %v438, %v439
        %v441 = vsel %vm185, %v366, 0.0
        %v442 = vrot.slane %v441, 4
        %v443 = vadd.f32 %v441, %v442
        %v444 = vrot.slane %v443, 2
        %v445 = vadd.f32 %v443, %v444
        %v446 = vrot.slane %v445, 1
        %v447 = vadd.f32 %v445, %v446
        %v448 = vsel %vm185, %v349, 0.0
        %v449 = vrot.slane %v448, 4
        %v450 = vadd.f32 %v448, %v449
        %v451 = vrot.slane %v450, 2
        %v452 = vadd.f32 %v450, %v451
        %v453 = vrot.slane %v452, 1
        %v454 = vadd.f32 %v452, %v453
        %v455 = vsel %vm185, %v367, 0.0
        %v456 = vrot.slane %v455, 4
        %v457 = vadd.f32 %v455, %v456
        %v458 = vrot.slane %v457, 2
        %v459 = vadd.f32 %v457, %v458
        %v460 = vrot.slane %v459, 1
        %v461 = vadd.f32 %v459, %v460
        %v462 = vsel %vm185, %v351, 0.0
        %v463 = vrot.slane %v462, 4
        %v464 = vadd.f32 %v462, %v463
        %v465 = vrot.slane %v464, 2
        %v466 = vadd.f32 %v464, %v465
        %v467 = vrot.slane %v466, 1
        %v468 = vadd.f32 %v466, %v467
        %v469 = vsel %vm185, %v368, 0.0
        %v470 = vrot.slane %v469, 4
        %v471 = vadd.f32 %v469, %v470
        %v472 = vrot.slane %v471, 2
        %v473 = vadd.f32 %v471, %v472
        %v474 = vrot.slane %v473, 1
        %v475 = vadd.f32 %v473, %v474
        %v476 = vsel %vm185, %v353, 0.0
        %v477 = vrot.slane %v476, 4
        %v478 = vadd.f32 %v476, %v477
        %v479 = vrot.slane %v478, 2
        %v480 = vadd.f32 %v478, %v479
        %v481 = vrot.slane %v480, 1
        %v482 = vadd.f32 %v480, %v481
        %v483 = vsel %vm185, %v369, 0.0
        %v484 = vrot.slane %v483, 4
        %v485 = vadd.f32 %v483, %v484
        %v486 = vrot.slane %v485, 2
        %v487 = vadd.f32 %v485, %v486
        %v488 = vrot.slane %v487, 1
        %v489 = vadd.f32 %v487, %v488
        %v490 = vrcp.pop %v384
        %v491 = vrcp.pop %v391
        %v492 = vrcp.pop %v398
        %v493 = vrcp.pop %v405
        %v494 = vrcp.pop %v412
        %v495 = vrcp.pop %v419
        %v496 = vrcp.pop %v426
        %v497 = vrcp.pop %v433
        %v498 = vrcp.pop %v440
        %v499 = vrcp.pop %v447
        %v500 = vrcp.pop %v454
        %v501 = vrcp.pop %v461
        %v502 = vrcp.pop %v468
        %v503 = vrcp.pop %v475
        %v504 = vrcp.pop %v482
        %v505 = vrcp.pop %v489
        %v522 = vcombine.low %v490, %v491
        %v523 = vcombine.low %v492, %v493
        %v524 = vcombine.low %v494, %v495
        %v525 = vcombine.low %v496, %v497
        %v526 = vcombine.low %v498, %v499
        %v527 = vcombine.low %v500, %v501
        %v528 = vcombine.low %v502, %v503
        %v529 = vcombine.low %v504, %v505
        %v538 = vmul.f32 %v339, %v522
        %v539 = vmul.f32 %v341, %v523
        %v540 = vmul.f32 %v343, %v524
        %v541 = vmul.f32 %v345, %v525
        %v542 = vmul.f32 %v347, %v526
        %v543 = vmul.f32 %v349, %v527
        %v544 = vmul.f32 %v351, %v528
        %v545 = vmul.f32 %v353, %v529
        %546 = vst [vmem:[%s150] sm:$0xff] %v538
        %547 = vst [vmem:[%s150 + $0x8] sm:$0xff] %v539
        %548 = vst [vmem:[%s150 + $0x10] sm:$0xff] %v540
        %549 = vst [vmem:[%s150 + $0x18] sm:$0xff] %v541
        %550 = vst [vmem:[%s150 + $0x20] sm:$0xff] %v542
        %551 = vst [vmem:[%s150 + $0x28] sm:$0xff] %v543
        %552 = vst [vmem:[%s150 + $0x30] sm:$0xff] %v544
        %553 = vst [vmem:[%s150 + $0x38] sm:$0xff] %v545
        %s554 = sand.u32 %s68, 1
        %s555 = scalar_lea.sflag [#allocation4], %s554
        %s556 = sand.u32 %s68, 1
        %s557 = smul.addr %s556, 64
        %s558 = scalar_lea.vmem [#allocation5], %s557
        // Predicated region
        $region29: #{tpu_custom_call.1} parent=23 // pred_check
          %p559 = pneg %p78
        $region30: #{tpu_custom_call.1} parent=23 // pred_check_branch
          %561 = sbr.rel (%p559) target = $region32
        $region31: #{tpu_custom_call.1} parent=23 // pred_region
          %s562 = smul.u32 16, %s23
          %s564 = ssub.s32 1024, 1024
          %565 = vsyncadd %s555, %s564
          %s566 = smul.addr %s22, 16
          %s567 = sadd.s32 %s562, %s566
          %s568 = smul.addr %s567, 64
          %s569 = scalar_lea.hbm %s1, %s568
          %s571 = sshll.u32 %s558, 4
          %s572 = int_to_ptr.vmem [resolvable:$true] %s571
          %574 = dma.vmem_to_hbm [thread:$0]  %s572, 1024, %s569, %s555
        $region32: #{tpu_custom_call.1} parent=23 // pred_fallthru
          _
      $region24: #{tpu_custom_call.1} parent=5 // pred_fallthru
        _
      %p575 = scmp.le.s32.totalorder 2, %s13
      // Predicated region
      $region33: #{tpu_custom_call.1} parent=5 // pred_check
        %p576 = pneg %p575
      $region34: #{tpu_custom_call.1} parent=5 // pred_check_branch
        %578 = sbr.rel (%p576) target = $region36
      $region35: #{tpu_custom_call.1} parent=5 // pred_region
        %s579 = ssub.s32 %s13, 2
        // Predicated region
        $region37: #{tpu_custom_call.1} parent=35 // pred_check
          %p580 = pneg %p84
        $region38: #{tpu_custom_call.1} parent=35 // pred_check_branch
          %582 = sbr.rel (%p580) target = $region40
        $region39: #{tpu_custom_call.1} parent=35 // pred_region
          %s583 = sand.u32 %s69, 1
          %s584 = scalar_lea.sflag [#allocation4], %s583
          %s585 = sand.u32 %s69, 1
          %s586 = smul.addr %s585, 64
          %s587 = scalar_lea.vmem [#allocation5], %s586
          %588 = dma.done %s584, 1024
        $region40: #{tpu_custom_call.1} parent=35 // pred_fallthru
          _
      $region36: #{tpu_custom_call.1} parent=5 // pred_fallthru
        _
    $region6: #{tpu_custom_call.1} parent=1 // loop_footer
      %s17 = sadd.s32 1, %s13
    $region7: #{tpu_custom_call.1} parent=1 // loop_footer_branch
      %12 = sbr.rel target = $region3
    $region8: #{tpu_custom_call.1} parent=1 // loop_exit
      _
    %589 = vsyncpa [#allocation3], 1
    %s590 = scalar_lea.sflag [#allocation3], 1
    %591 = vsyncpa %s590, 1
    %592 = vsyncpa [#allocation4], 1
    %s593 = scalar_lea.sflag [#allocation4], 1
    %594 = vsyncpa %s593, 1

</llo_original>
